<compile_context>
chip_gen: v7x
topology: tpu7x:2x2x1
jax: 0.10.0
libtpu: 0.0.40
codegen_flags: <defaults>
</compile_context>

<pallas_src>
import jax
import jax.numpy as jnp
from jax.experimental import pallas as pl
from jax.experimental.pallas import tpu as pltpu


# ----------------------------------------------------------------------------
# Forward path: pure identity — no kernel, no data movement (review item #1).
# ----------------------------------------------------------------------------
def c_identity_forward(x, y):
    """Pallas-side equivalent of CIdentity.forward: returns (x, y) unchanged."""
    return x, y


# ----------------------------------------------------------------------------
# Optional materialized copy: single HBM→HBM DMA, no VMEM bounce (review #2).
# ----------------------------------------------------------------------------
def _hbm_copy_kernel(x_ref, o_ref, sem):
    # x_ref / o_ref live in HBM (memory_space=pl.ANY); one DMA moves the whole
    # tensor.  The DMA engine alone saturates HBM copy bandwidth, so there is
    # no benefit to tiling through VMEM for a compute-free copy.
    cp = pltpu.make_async_copy(x_ref, o_ref, sem)
    cp.start()
    cp.wait()


def pallas_identity_copy(a):
    """Materialized identity: returns a fresh array equal to `a`.

    Use only when the output must not alias the input; otherwise prefer the
    zero-cost pass-through in `c_identity_forward`.
    """
    n_bytes = a.size * jnp.dtype(a.dtype).itemsize
    return pl.pallas_call(
        _hbm_copy_kernel,
        out_shape=jax.ShapeDtypeStruct(a.shape, a.dtype),
        in_specs=[pl.BlockSpec(memory_space=pl.ANY)],
        out_specs=pl.BlockSpec(memory_space=pl.ANY),
        scratch_shapes=[pltpu.SemaphoreType.DMA],
        cost_estimate=pl.CostEstimate(
            flops=0, transcendentals=0, bytes_accessed=2 * n_bytes),
    )(a)


if __name__ == "__main__":
    key = jax.random.PRNGKey(0)
    kx, ky = jax.random.split(key)

    # Shapes consistent with the module's (shape-agnostic) forward:
    # an NCHW-like activation and a small 2-D tensor.
    x = jax.random.normal(kx, (2, 4, 16, 16), dtype=jnp.float32)
    y = jax.random.normal(ky, (2, 32), dtype=jnp.float32)

    # Semantic forward: pure pass-through (zero data movement).
    out_x, out_y = c_identity_forward(x, y)
    jax.block_until_ready((out_x, out_y))
    assert out_x.shape == x.shape and out_x.dtype == x.dtype
    assert out_y.shape == y.shape and out_y.dtype == y.dtype
    assert bool(jnp.all(out_x == x)) and bool(jnp.all(out_y == y))

    # Exercise the Pallas HBM→HBM DMA copy path once (materialized identity).
    copy_x = pallas_identity_copy(x)
    copy_y = pallas_identity_copy(y)
    jax.block_until_ready((copy_x, copy_y))
    assert copy_x.shape == x.shape and copy_x.dtype == x.dtype
    assert copy_y.shape == y.shape and copy_y.dtype == y.dtype
    assert bool(jnp.all(copy_x == x)) and bool(jnp.all(copy_y == y))

    print("KERNEL_OK")
</pallas_src>

<mosaic_0001>
module attributes {stable_mosaic.version = 11 : i64} {
  func.func @_hbm_copy_kernel(%arg0: memref<2x4x16x16xf32, #tpu.memory_space<any>>, %arg1: memref<2x4x16x16xf32, #tpu.memory_space<any>>, %arg2: memref<!tpu.dma_semaphore, #tpu.memory_space<semaphore_mem>>) attributes {dimension_semantics = [], scalar_prefetch = 0 : i64, scratch_operands = 1 : i64, tpu.core_type = #tpu.core_type<tc>} {
    tpu.enqueue_dma source(%arg0 : memref<2x4x16x16xf32, #tpu.memory_space<any>>) target(%arg1 : memref<2x4x16x16xf32, #tpu.memory_space<any>>) target_semaphore(%arg2 : memref<!tpu.dma_semaphore, #tpu.memory_space<semaphore_mem>>)
    tpu.wait_dma2 semaphore(%arg2 : memref<!tpu.dma_semaphore, #tpu.memory_space<semaphore_mem>>) src(%arg0 : memref<2x4x16x16xf32, #tpu.memory_space<any>>) dst(%arg1 : memref<2x4x16x16xf32, #tpu.memory_space<any>>)
    return
  }
}

</mosaic_0001>

<llo_original>
// kernel: tpu_custom_call.1
$region0: #{tpu_custom_call.1}
  #allocation0 [shape = 'u32[]', space=smem, size = 0x4, offset = 0x4, fixed_abs, tag = 'smem constant byte address 0x4 - core index']
  #allocation1 [shape = 'u32[144,128]{1,0:T(1,128)}', space=vmem, size = 0x12000, scoped, tag = 'internal scratch']
  #allocation2 [shape = 's32[1]{0}', space=sflag, size = 0x4, scoped, tag = 'scratch operand']
  #allocation3 [shape = 's32[]', space=sflag, size = 0x4, offset = 0, fixed_abs, tag = 'sflag constant byte address 0x0 - dummy sync flag']
  #allocation4 [shape = 'u32[0]{0}', space=smem, size = 0, offset = 0, fixed_abs, tag = 'smem constant byte address 0x0 - null']
  %s0 = inlined_call_operand.hbm [shape: f32[2,4,16,16], index: 0, kind: input, shape index: {}]
  %s1 = inlined_call_operand.hbm [shape: f32[2,4,16,16], index: 1, kind: output, shape index: {}]
  %s2 = sld [smem:[#allocation0]]
  $region2: #{tpu_custom_call.1} parent=0
    _
  %s4 = ssub.s32 1, %s2
  %s5 = scalar_select 0, %s4, %s2
  %s7 = sshll.u32 1, 14
  %s8 = sxor.u32 4294967295, %s7
  %s11 = sshll.u32 3, 24
  %s12 = sxor.u32 4294967295, %s11
  %s13 = sand.u32 0, %s12
  %s15 = sor.u32 %s13, 0
  %18 = dma.general %s0, 2048, %s1, [#allocation2], [#allocation3], [#allocation4], %s15, 0
  %s19 = smul.u32 2, 4
  %s20 = smul.u32 %s19, 16
  %s21 = smul.u32 %s20, 1
  %s22 = sshll.u32 %s21, 4
  %23 = dma.done [#allocation2], %s22
  %24 = vsyncmov [#allocation2]
  %s25 = vpop.sfrf %24
  %p26 = scmp.eq.s32.totalorder %s25, 0
  %p27 = pneg %p26
  %29 = shalt.err (%p27)

</llo_original>
